<compile_context>
chip_gen: v7x
topology: tpu7x:2x2x1
jax: 0.10.0
libtpu: 0.0.40
codegen_flags: <defaults>
</compile_context>

<pallas_src>
import jax
import jax.numpy as jnp
from jax.experimental import pallas as pl
from jax.experimental.pallas import tpu as pltpu


def mlp_kernel(w1_ref, b1_ref, w2_ref, b2_ref, x_ref, o_ref):
    """One packed activation tile (24, tb//8) -> one output tile (8, tb//8).

    w1_ref: (9,) f32 SMEM  -- fc.weight transposed to (in, out), row-major flat
    b1_ref: (3,) f32 SMEM  -- fc.bias
    w2_ref: (3,) f32 SMEM  -- fc2.weight transposed to (in, out), flat
    b2_ref: (1,) f32 SMEM  -- fc2.bias
    x_ref : (24, tb//8) VMEM -- rows 0:8 = feature 0, 8:16 = feature 1,
                                16:24 = feature 2; batch on sublanes+lanes
    o_ref : (8, tb//8) VMEM  -- fully dense output tile
    """
    # Fully dense (8, tb//8) per-feature tiles (one batch element per vreg slot).
    x0 = x_ref[0:8, :].astype(jnp.float32)
    x1 = x_ref[8:16, :].astype(jnp.float32)
    x2 = x_ref[16:24, :].astype(jnp.float32)

    # Hoist all 16 SMEM scalar reads once (not re-emitted per output neuron).
    w1_00 = w1_ref[0]; w1_01 = w1_ref[1]; w1_02 = w1_ref[2]
    w1_10 = w1_ref[3]; w1_11 = w1_ref[4]; w1_12 = w1_ref[5]
    w1_20 = w1_ref[6]; w1_21 = w1_ref[7]; w1_22 = w1_ref[8]
    b1_0 = b1_ref[0]; b1_1 = b1_ref[1]; b1_2 = b1_ref[2]
    w2_0 = w2_ref[0]; w2_1 = w2_ref[1]; w2_2 = w2_ref[2]
    b2_0 = b2_ref[0]

    # Hidden layer: h_j = relu(sum_k x_k * W1[k, j] + b1[j])   (pure VPU)
    h0 = jnp.maximum(x0 * w1_00 + x1 * w1_10 + x2 * w1_20 + b1_0, 0.0)
    h1 = jnp.maximum(x0 * w1_01 + x1 * w1_11 + x2 * w1_21 + b1_1, 0.0)
    h2 = jnp.maximum(x0 * w1_02 + x1 * w1_12 + x2 * w1_22 + b1_2, 0.0)

    # Output layer: fold the bias into the last add (no zeros_like init).
    y = h0 * w2_0 + h1 * w2_1 + h2 * w2_2 + b2_0

    o_ref[...] = y.astype(o_ref.dtype)


def _cdiv(a, b):
    return -(-a // b)


def basic_nn_forward(x, w1, b1, w2, b2, *, max_tile=131072):
    """Forward pass of BasicNeuralNetwork.

    x : (B, 3)  (PyTorch nn.Linear layout)
    w1: (3, 3)  = fc.weight.T  (in, out)    b1: (3,)  = fc.bias
    w2: (3, 1)  = fc2.weight.T (in, out)    b2: (1,)  = fc2.bias
    Returns (B, 1).
    """
    B = x.shape[0]
    CHUNK = 8 * 128  # one fully dense (8, 128) f32 vreg worth of batch elements

    # --- Tile selection -----------------------------------------------------
    n_chunks = _cdiv(max(B, 1), CHUNK)
    max_chunks = max(max_tile // CHUNK, 1)
    tb_chunks = min(n_chunks, max_chunks)
    if n_chunks >= 2:
        # Keep at least 2 grid steps so v7x's two TensorCores both get work.
        tb_chunks = min(tb_chunks, _cdiv(n_chunks, 2))
    tb = tb_chunks * CHUNK                      # batch elements per grid step
    n_tiles = _cdiv(n_chunks, tb_chunks)        # grid size
    B_pad = n_tiles * tb
    cols = B_pad // 8                           # lane-axis extent of packed x

    # --- Pack batch across sublanes and lanes (layout plumbing, outside kernel)
    x_pad = x if B_pad == B else jnp.pad(x, ((0, B_pad - B), (0, 0)))
    # (B_pad, 3) -> (3, B_pad) -> (3, 8, cols) -> (24, cols)
    x_packed = x_pad.T.reshape(3, 8, cols).reshape(24, cols)

    params = (
        w1.astype(jnp.float32).reshape(9),
        b1.astype(jnp.float32).reshape(3),
        w2.astype(jnp.float32).reshape(3),
        b2.astype(jnp.float32).reshape(1),
    )

    out_packed = pl.pallas_call(
        mlp_kernel,
        out_shape=jax.ShapeDtypeStruct((8, cols), x.dtype),
        grid=(n_tiles,),
        in_specs=[
            pl.BlockSpec(memory_space=pltpu.MemorySpace.SMEM),   # w1 flat (9,)
            pl.BlockSpec(memory_space=pltpu.MemorySpace.SMEM),   # b1 (3,)
            pl.BlockSpec(memory_space=pltpu.MemorySpace.SMEM),   # w2 flat (3,)
            pl.BlockSpec(memory_space=pltpu.MemorySpace.SMEM),   # b2 (1,)
            pl.BlockSpec((24, tb // 8), lambda i: (0, i)),       # x packed
        ],
        out_specs=pl.BlockSpec((8, tb // 8), lambda i: (0, i)),
        compiler_params=pltpu.CompilerParams(
            dimension_semantics=("parallel",)),
    )(*params, x_packed)

    # Unpack: (8, cols) flattens row-major straight back to batch order.
    return out_packed.reshape(B_pad)[:B].reshape(B, 1)


def init_params(key, dtype=jnp.float32):
    # Deterministic init mimicking PyTorch's U(-1/sqrt(fan_in), 1/sqrt(fan_in)).
    k1, k2, k3, k4 = jax.random.split(key, 4)
    bound = 1.0 / jnp.sqrt(3.0)                                  # fan_in = 3
    w1 = jax.random.uniform(k1, (3, 3), dtype, -bound, bound)    # fc.weight.T
    b1 = jax.random.uniform(k2, (3,), dtype, -bound, bound)      # fc.bias
    w2 = jax.random.uniform(k3, (3, 1), dtype, -bound, bound)    # fc2.weight.T
    b2 = jax.random.uniform(k4, (1,), dtype, -bound, bound)      # fc2.bias
    return w1, b1, w2, b2


if __name__ == "__main__":
    key = jax.random.PRNGKey(0)
    kx, kp = jax.random.split(key)

    B = 8
    x = jax.random.normal(kx, (B, 3), jnp.float32)
    w1, b1, w2, b2 = init_params(kp)

    out = basic_nn_forward(x, w1, b1, w2, b2)
    out = jax.block_until_ready(out)

    # Pure-JAX reference check.
    ref = jnp.maximum(x @ w1 + b1, 0.0) @ w2 + b2
    assert out.shape == (B, 1), out.shape
    assert jnp.allclose(out, ref, atol=1e-5, rtol=1e-5), "mismatch vs reference"

    # Also exercise a batch large enough to hit multiple grid steps / padding.
    B2 = 3000
    x2 = jax.random.normal(kx, (B2, 3), jnp.float32)
    out2 = jax.block_until_ready(basic_nn_forward(x2, w1, b1, w2, b2, max_tile=2048))
    ref2 = jnp.maximum(x2 @ w1 + b1, 0.0) @ w2 + b2
    assert out2.shape == (B2, 1), out2.shape
    assert jnp.allclose(out2, ref2, atol=1e-5, rtol=1e-5), "mismatch vs reference (large B)"

    print("KERNEL_OK")
</pallas_src>

<mosaic_0001>
module attributes {stable_mosaic.version = 11 : i64} {
  func.func @mlp_kernel(%arg0: i32, %arg1: memref<9xf32, #tpu.memory_space<smem>>, %arg2: memref<3xf32, #tpu.memory_space<smem>>, %arg3: memref<3xf32, #tpu.memory_space<smem>>, %arg4: memref<1xf32, #tpu.memory_space<smem>>, %arg5: memref<24x128xf32, #tpu.memory_space<vmem>>, %arg6: memref<8x128xf32, #tpu.memory_space<vmem>>) attributes {dimension_semantics = [#tpu.dimension_semantics<parallel>], iteration_bounds = array<i64: 1>, scalar_prefetch = 0 : i64, scratch_operands = 0 : i64, tpu.core_type = #tpu.core_type<tc>, window_params = [{transform_indices = @transform_0, window_bounds = array<i64: 9>}, {transform_indices = @transform_1, window_bounds = array<i64: 3>}, {transform_indices = @transform_2, window_bounds = array<i64: 3>}, {transform_indices = @transform_3, window_bounds = array<i64: 1>}, {transform_indices = @transform_4, window_bounds = array<i64: 24, 128>}, {transform_indices = @transform_5, window_bounds = array<i64: 8, 128>}]} {
    %c0 = arith.constant 0 : index
    %c0_0 = arith.constant 0 : index
    %0 = vector.load %arg5[%c0, %c0_0] : memref<24x128xf32, #tpu.memory_space<vmem>>, vector<8x128xf32>
    %c8 = arith.constant 8 : index
    %c0_1 = arith.constant 0 : index
    %1 = vector.load %arg5[%c8, %c0_1] : memref<24x128xf32, #tpu.memory_space<vmem>>, vector<8x128xf32>
    %c16 = arith.constant 16 : index
    %c0_2 = arith.constant 0 : index
    %2 = vector.load %arg5[%c16, %c0_2] : memref<24x128xf32, #tpu.memory_space<vmem>>, vector<8x128xf32>
    %c0_3 = arith.constant 0 : index
    %3 = memref.load %arg1[%c0_3] : memref<9xf32, #tpu.memory_space<smem>>
    %c1 = arith.constant 1 : index
    %4 = memref.load %arg1[%c1] : memref<9xf32, #tpu.memory_space<smem>>
    %c2 = arith.constant 2 : index
    %5 = memref.load %arg1[%c2] : memref<9xf32, #tpu.memory_space<smem>>
    %c3 = arith.constant 3 : index
    %6 = memref.load %arg1[%c3] : memref<9xf32, #tpu.memory_space<smem>>
    %c4 = arith.constant 4 : index
    %7 = memref.load %arg1[%c4] : memref<9xf32, #tpu.memory_space<smem>>
    %c5 = arith.constant 5 : index
    %8 = memref.load %arg1[%c5] : memref<9xf32, #tpu.memory_space<smem>>
    %c6 = arith.constant 6 : index
    %9 = memref.load %arg1[%c6] : memref<9xf32, #tpu.memory_space<smem>>
    %c7 = arith.constant 7 : index
    %10 = memref.load %arg1[%c7] : memref<9xf32, #tpu.memory_space<smem>>
    %c8_4 = arith.constant 8 : index
    %11 = memref.load %arg1[%c8_4] : memref<9xf32, #tpu.memory_space<smem>>
    %c0_5 = arith.constant 0 : index
    %12 = memref.load %arg2[%c0_5] : memref<3xf32, #tpu.memory_space<smem>>
    %c1_6 = arith.constant 1 : index
    %13 = memref.load %arg2[%c1_6] : memref<3xf32, #tpu.memory_space<smem>>
    %c2_7 = arith.constant 2 : index
    %14 = memref.load %arg2[%c2_7] : memref<3xf32, #tpu.memory_space<smem>>
    %c0_8 = arith.constant 0 : index
    %15 = memref.load %arg3[%c0_8] : memref<3xf32, #tpu.memory_space<smem>>
    %c1_9 = arith.constant 1 : index
    %16 = memref.load %arg3[%c1_9] : memref<3xf32, #tpu.memory_space<smem>>
    %c2_10 = arith.constant 2 : index
    %17 = memref.load %arg3[%c2_10] : memref<3xf32, #tpu.memory_space<smem>>
    %c0_11 = arith.constant 0 : index
    %18 = memref.load %arg4[%c0_11] : memref<1xf32, #tpu.memory_space<smem>>
    %19 = vector.broadcast %3 : f32 to vector<8x128xf32>
    %20 = arith.mulf %0, %19 : vector<8x128xf32>
    %21 = vector.broadcast %6 : f32 to vector<8x128xf32>
    %22 = arith.mulf %1, %21 : vector<8x128xf32>
    %23 = arith.addf %20, %22 : vector<8x128xf32>
    %24 = vector.broadcast %9 : f32 to vector<8x128xf32>
    %25 = arith.mulf %2, %24 : vector<8x128xf32>
    %26 = arith.addf %23, %25 : vector<8x128xf32>
    %27 = vector.broadcast %12 : f32 to vector<8x128xf32>
    %28 = arith.addf %26, %27 : vector<8x128xf32>
    %cst = arith.constant 0.000000e+00 : f32
    %29 = vector.broadcast %cst : f32 to vector<8x128xf32>
    %30 = arith.maximumf %28, %29 : vector<8x128xf32>
    %31 = vector.broadcast %4 : f32 to vector<8x128xf32>
    %32 = arith.mulf %0, %31 : vector<8x128xf32>
    %33 = vector.broadcast %7 : f32 to vector<8x128xf32>
    %34 = arith.mulf %1, %33 : vector<8x128xf32>
    %35 = arith.addf %32, %34 : vector<8x128xf32>
    %36 = vector.broadcast %10 : f32 to vector<8x128xf32>
    %37 = arith.mulf %2, %36 : vector<8x128xf32>
    %38 = arith.addf %35, %37 : vector<8x128xf32>
    %39 = vector.broadcast %13 : f32 to vector<8x128xf32>
    %40 = arith.addf %38, %39 : vector<8x128xf32>
    %cst_12 = arith.constant 0.000000e+00 : f32
    %41 = vector.broadcast %cst_12 : f32 to vector<8x128xf32>
    %42 = arith.maximumf %40, %41 : vector<8x128xf32>
    %43 = vector.broadcast %5 : f32 to vector<8x128xf32>
    %44 = arith.mulf %0, %43 : vector<8x128xf32>
    %45 = vector.broadcast %8 : f32 to vector<8x128xf32>
    %46 = arith.mulf %1, %45 : vector<8x128xf32>
    %47 = arith.addf %44, %46 : vector<8x128xf32>
    %48 = vector.broadcast %11 : f32 to vector<8x128xf32>
    %49 = arith.mulf %2, %48 : vector<8x128xf32>
    %50 = arith.addf %47, %49 : vector<8x128xf32>
    %51 = vector.broadcast %14 : f32 to vector<8x128xf32>
    %52 = arith.addf %50, %51 : vector<8x128xf32>
    %cst_13 = arith.constant 0.000000e+00 : f32
    %53 = vector.broadcast %cst_13 : f32 to vector<8x128xf32>
    %54 = arith.maximumf %52, %53 : vector<8x128xf32>
    %55 = vector.broadcast %15 : f32 to vector<8x128xf32>
    %56 = arith.mulf %30, %55 : vector<8x128xf32>
    %57 = vector.broadcast %16 : f32 to vector<8x128xf32>
    %58 = arith.mulf %42, %57 : vector<8x128xf32>
    %59 = arith.addf %56, %58 : vector<8x128xf32>
    %60 = vector.broadcast %17 : f32 to vector<8x128xf32>
    %61 = arith.mulf %54, %60 : vector<8x128xf32>
    %62 = arith.addf %59, %61 : vector<8x128xf32>
    %63 = vector.broadcast %18 : f32 to vector<8x128xf32>
    %64 = arith.addf %62, %63 : vector<8x128xf32>
    %c0_14 = arith.constant 0 : index
    %c0_15 = arith.constant 0 : index
    %65 = vector.load %arg6[%c0_14, %c0_15] : memref<8x128xf32, #tpu.memory_space<vmem>>, vector<8x128xf32>
    tpu.vector_store %arg6[%c0_14, %c0_15], %64 {strides = array<i32>} : memref<8x128xf32, #tpu.memory_space<vmem>>, vector<8x128xf32>,
    return
  }
  func.func @transform_0(%arg0: i32) -> i32 {
    %c0_i32 = arith.constant 0 : i32
    %c0_i32_0 = arith.constant 0 : i32
    return %c0_i32 : i32
  }
  func.func @transform_1(%arg0: i32) -> i32 {
    %c0_i32 = arith.constant 0 : i32
    %c0_i32_0 = arith.constant 0 : i32
    return %c0_i32 : i32
  }
  func.func @transform_2(%arg0: i32) -> i32 {
    %c0_i32 = arith.constant 0 : i32
    %c0_i32_0 = arith.constant 0 : i32
    return %c0_i32 : i32
  }
  func.func @transform_3(%arg0: i32) -> i32 {
    %c0_i32 = arith.constant 0 : i32
    %c0_i32_0 = arith.constant 0 : i32
    return %c0_i32 : i32
  }
  func.func @transform_4(%arg0: i32) -> (i32, i32) {
    %c0_i32 = arith.constant 0 : i32
    %c0_i32_0 = arith.constant 0 : i32
    return %c0_i32, %arg0 : i32, i32
  }
  func.func @transform_5(%arg0: i32) -> (i32, i32) {
    %c0_i32 = arith.constant 0 : i32
    %c0_i32_0 = arith.constant 0 : i32
    return %c0_i32, %arg0 : i32, i32
  }
}

</mosaic_0001>

<llo_original>
// kernel: tpu_custom_call.1
$region0: #{tpu_custom_call.1}
  #allocation0 [shape = 'u32[]', space=smem, size = 0x4, offset = 0x4, fixed_abs, tag = 'smem constant byte address 0x4 - core index']
  #allocation1 [shape = 'u32[144,128]{1,0:T(1,128)}', space=vmem, size = 0x12000, scoped, tag = 'internal scratch']
  #allocation2 [shape = 'f32[1]{0:T(128)S(6)}', space=smem, size = 0x200, scoped, tag = 'scoped memory for tpu_custom_call.1']
  %s0 = inlined_call_operand.vmem [shape: f32[9], index: 0, kind: input, shape index: {}]
  %s1 = inlined_call_operand.vmem [shape: f32[3], index: 1, kind: input, shape index: {}]
  %s2 = inlined_call_operand.vmem [shape: f32[3], index: 2, kind: input, shape index: {}]
  %s3 = inlined_call_operand.<no memory space> [shape: f32[1], index: 3, kind: input, shape index: {}]
  %s4 = inlined_call_operand.hbm [shape: f32[24,128], index: 4, kind: input, shape index: {}]
  %s5 = inlined_call_operand.hbm [shape: f32[8,128], index: 5, kind: output, shape index: {}]
  %s6 = sld [smem:[#allocation0]]
  $region46: #{tpu_custom_call.1} parent=0
    _
  %s8 = ssub.s32 1, %s6
  %s9 = scalar_select 0, %s8, %s6
  %10 = sst [smem:[#allocation2]] %s3
  $region1: #{tpu_custom_call.1} parent=0
    #allocation3 [shape = 'u8[512]{0}', space=smem, size = 0x200, scoped, tag = 'input window, operand 0, single buffered']
    #allocation4 [shape = 's32[1]{0}', space=sflag, size = 0x4, scoped, tag = 'scoped memory for tpu_custom_call.1']
    #allocation5 [shape = 's32[1]{0}', space=sflag, size = 0x4, scoped, tag = 'scoped memory for tpu_custom_call.1']
    #allocation6 [shape = 's32[1]{0}', space=sflag, size = 0x4, scoped, tag = 'scoped memory for tpu_custom_call.1']
    #allocation7 [shape = 'u8[512]{0}', space=smem, size = 0x200, scoped, tag = 'input window, operand 1, single buffered']
    #allocation8 [shape = 's32[1]{0}', space=sflag, size = 0x4, scoped, tag = 'scoped memory for tpu_custom_call.1']
    #allocation9 [shape = 'u8[512]{0}', space=smem, size = 0x200, scoped, tag = 'input window, operand 2, single buffered']
    #allocation10 [shape = 'u8[12288]{0}', space=vmem, size = 0x3000, scoped, tag = 'input window, operand 4, single buffered']
    #allocation11 [shape = 'u8[4096]{0}', space=vmem, size = 0x1000, scoped, tag = 'output window, operand 0, single buffered']
    %11 = vsyncpa [#allocation6], 0
    %12 = vsyncpa [#allocation8], 0
    %13 = vsyncpa [#allocation4], 0
    %14 = vsyncpa [#allocation5], 0
    // Predicated region
    $region2: #{tpu_custom_call.1} parent=1 // pred_check
      _
    $region3: #{tpu_custom_call.1} parent=1 // pred_check_branch
      %16 = sbr.rel (0) target = $region5
    $region4: #{tpu_custom_call.1} parent=1 // pred_region
      %s18 = ssub.s32 16, 16
      %19 = vsyncadd [#allocation6], %s18
      %s21 = sshll.u32 %s0, 4
      %s22 = int_to_ptr.vmem [resolvable:$true] %s21
      %24 = dma.vmem_to_smem %s22, 16, [#allocation3], [#allocation6]
    $region5: #{tpu_custom_call.1} parent=1 // pred_fallthru
      _
    // Predicated region
    $region6: #{tpu_custom_call.1} parent=1 // pred_check
      _
    $region7: #{tpu_custom_call.1} parent=1 // pred_check_branch
      %26 = sbr.rel (0) target = $region9
    $region8: #{tpu_custom_call.1} parent=1 // pred_region
      %s28 = ssub.s32 16, 16
      %29 = vsyncadd [#allocation8], %s28
      %s31 = sshll.u32 %s1, 4
      %s32 = int_to_ptr.vmem [resolvable:$true] %s31
      %34 = dma.vmem_to_smem %s32, 16, [#allocation7], [#allocation8]
    $region9: #{tpu_custom_call.1} parent=1 // pred_fallthru
      _
    // Predicated region
    $region10: #{tpu_custom_call.1} parent=1 // pred_check
      _
    $region11: #{tpu_custom_call.1} parent=1 // pred_check_branch
      %36 = sbr.rel (0) target = $region13
    $region12: #{tpu_custom_call.1} parent=1 // pred_region
      %s38 = ssub.s32 16, 16
      %39 = vsyncadd [#allocation8], %s38
      %s41 = sshll.u32 %s2, 4
      %s42 = int_to_ptr.vmem [resolvable:$true] %s41
      %44 = dma.vmem_to_smem %s42, 16, [#allocation9], [#allocation8]
    $region13: #{tpu_custom_call.1} parent=1 // pred_fallthru
      _
    // Predicated region
    $region14: #{tpu_custom_call.1} parent=1 // pred_check
      _
    $region15: #{tpu_custom_call.1} parent=1 // pred_check_branch
      %46 = sbr.rel (0) target = $region17
    $region16: #{tpu_custom_call.1} parent=1 // pred_region
      _
    $region17: #{tpu_custom_call.1} parent=1 // pred_fallthru
      _
    // Predicated region
    $region18: #{tpu_custom_call.1} parent=1 // pred_check
      _
    $region19: #{tpu_custom_call.1} parent=1 // pred_check_branch
      %48 = sbr.rel (0) target = $region21
    $region20: #{tpu_custom_call.1} parent=1 // pred_region
      %s50 = ssub.s32 384, 384
      %51 = vsyncadd [#allocation4], %s50
      %s52 = sshll.u32 [#allocation10], 4
      %s53 = int_to_ptr.vmem [resolvable:$true] %s52
      %58 = dma.hbm_to_vmem [thread:$0]  %s4, 384, %s53, [#allocation4], 128, 128, 8
    $region21: #{tpu_custom_call.1} parent=1 // pred_fallthru
      _
    // Predicated region
    $region22: #{tpu_custom_call.1} parent=1 // pred_check
      _
    $region23: #{tpu_custom_call.1} parent=1 // pred_check_branch
      %60 = sbr.rel (0) target = $region25
    $region24: #{tpu_custom_call.1} parent=1 // pred_region
      %61 = dma.done [#allocation6], 16
    $region25: #{tpu_custom_call.1} parent=1 // pred_fallthru
      _
    // Predicated region
    $region26: #{tpu_custom_call.1} parent=1 // pred_check
      _
    $region27: #{tpu_custom_call.1} parent=1 // pred_check_branch
      %63 = sbr.rel (0) target = $region29
    $region28: #{tpu_custom_call.1} parent=1 // pred_region
      %64 = dma.done [#allocation8], 16
    $region29: #{tpu_custom_call.1} parent=1 // pred_fallthru
      _
    // Predicated region
    $region30: #{tpu_custom_call.1} parent=1 // pred_check
      _
    $region31: #{tpu_custom_call.1} parent=1 // pred_check_branch
      %66 = sbr.rel (0) target = $region33
    $region32: #{tpu_custom_call.1} parent=1 // pred_region
      %67 = dma.done [#allocation8], 16
    $region33: #{tpu_custom_call.1} parent=1 // pred_fallthru
      _
    // Predicated region
    $region34: #{tpu_custom_call.1} parent=1 // pred_check
      _
    $region35: #{tpu_custom_call.1} parent=1 // pred_check_branch
      %69 = sbr.rel (0) target = $region37
    $region36: #{tpu_custom_call.1} parent=1 // pred_region
      %70 = dma.done [#allocation4], 384
    $region37: #{tpu_custom_call.1} parent=1 // pred_fallthru
      _
    %71 = sfence
    %v72 = vld [vmem:[#allocation10] sm:$0xff]
    %v73 = vld [vmem:[#allocation10 + $0x8] sm:$0xff]
    %v74 = vld [vmem:[#allocation10 + $0x10] sm:$0xff]
    %s75 = sld [smem:[#allocation3]]
    %s76 = sld [smem:[#allocation3 + $0x1]]
    %s77 = sld [smem:[#allocation3 + $0x2]]
    %s78 = sld [smem:[#allocation3 + $0x3]]
    %s79 = sld [smem:[#allocation3 + $0x4]]
    %s80 = sld [smem:[#allocation3 + $0x5]]
    %s81 = sld [smem:[#allocation3 + $0x6]]
    %s82 = sld [smem:[#allocation3 + $0x7]]
    %s83 = sld [smem:[#allocation3 + $0x8]]
    %s84 = sld [smem:[#allocation7]]
    %s85 = sld [smem:[#allocation7 + $0x1]]
    %s86 = sld [smem:[#allocation7 + $0x2]]
    %s87 = sld [smem:[#allocation9]]
    %s88 = sld [smem:[#allocation9 + $0x1]]
    %s89 = sld [smem:[#allocation9 + $0x2]]
    %s90 = sld [smem:[#allocation2]]
    %v91 = vstv %s75
    %v92 = vmul.f32 %v72, %v91
    %v93 = vstv %s78
    %v94 = vmul.f32 %v73, %v93
    %v95 = vadd.f32 %v92, %v94
    %v96 = vstv %s81
    %v97 = vmul.f32 %v74, %v96
    %v98 = vadd.f32 %v95, %v97
    %v99 = vstv %s84
    %v100 = vadd.f32 %v98, %v99
    %v101 = vmax.f32 %v100, 0.0
    %v102 = vstv %s76
    %v103 = vmul.f32 %v72, %v102
    %v104 = vstv %s79
    %v105 = vmul.f32 %v73, %v104
    %v106 = vadd.f32 %v103, %v105
    %v107 = vstv %s82
    %v108 = vmul.f32 %v74, %v107
    %v109 = vadd.f32 %v106, %v108
    %v110 = vstv %s85
    %v111 = vadd.f32 %v109, %v110
    %v112 = vmax.f32 %v111, 0.0
    %v113 = vstv %s77
    %v114 = vmul.f32 %v72, %v113
    %v115 = vstv %s80
    %v116 = vmul.f32 %v73, %v115
    %v117 = vadd.f32 %v114, %v116
    %v118 = vstv %s83
    %v119 = vmul.f32 %v74, %v118
    %v120 = vadd.f32 %v117, %v119
    %v121 = vstv %s86
    %v122 = vadd.f32 %v120, %v121
    %v123 = vmax.f32 %v122, 0.0
    %v124 = vstv %s87
    %v125 = vmul.f32 %v101, %v124
    %v126 = vstv %s88
    %v127 = vmul.f32 %v112, %v126
    %v128 = vadd.f32 %v125, %v127
    %v129 = vstv %s89
    %v130 = vmul.f32 %v123, %v129
    %v131 = vadd.f32 %v128, %v130
    %v132 = vstv %s90
    %v133 = vadd.f32 %v131, %v132
    %134 = vst [vmem:[#allocation11] sm:$0xff] %v133
    // Predicated region
    $region38: #{tpu_custom_call.1} parent=1 // pred_check
      _
    $region39: #{tpu_custom_call.1} parent=1 // pred_check_branch
      %136 = sbr.rel (0) target = $region41
    $region40: #{tpu_custom_call.1} parent=1 // pred_region
      %s138 = ssub.s32 128, 128
      %139 = vsyncadd [#allocation5], %s138
      %s141 = sshll.u32 [#allocation11], 4
      %s142 = int_to_ptr.vmem [resolvable:$true] %s141
      %144 = dma.vmem_to_hbm [thread:$0]  %s142, 128, %s5, [#allocation5]
    $region41: #{tpu_custom_call.1} parent=1 // pred_fallthru
      _
    // Predicated region
    $region42: #{tpu_custom_call.1} parent=1 // pred_check
      _
    $region43: #{tpu_custom_call.1} parent=1 // pred_check_branch
      %146 = sbr.rel (0) target = $region45
    $region44: #{tpu_custom_call.1} parent=1 // pred_region
      %147 = dma.done [#allocation5], 128
    $region45: #{tpu_custom_call.1} parent=1 // pred_fallthru
      _
    %148 = vsyncpa [#allocation4], 1
    %149 = vsyncpa [#allocation5], 1
    %150 = vsyncpa [#allocation6], 1
    %151 = vsyncpa [#allocation8], 1

</llo_original>
